<compile_context>
chip_gen: v7x
topology: tpu7x:2x2x1
jax: 0.10.0
libtpu: 0.0.40
codegen_flags: <defaults>
</compile_context>

<pallas_src>
import functools

import jax
import jax.numpy as jnp
from jax.experimental import pallas as pl
from jax.experimental.pallas import tpu as pltpu

LANE = 128
SUBLANE = 8


def _round_up(x, m):
    return (x + m - 1) // m * m


# ---------------------------------------------------------------------------
# Activation (f32 epilogue on the accumulator)
# ---------------------------------------------------------------------------

def _act(y, act_fun):
    if act_fun == "relu":
        return jnp.maximum(y, 0.0)
    if act_fun == "tanh":
        return jnp.tanh(y)
    if act_fun == "elu":
        # clamp before exp so the discarded branch never produces inf
        return jnp.where(y > 0, y, jnp.exp(jnp.minimum(y, 0.0)) - 1.0)
    raise ValueError(f"Activation function {act_fun} is not known")


# ---------------------------------------------------------------------------
# Fused forward kernel: input_lin -> L x (A @ (H @ W) + b) -> classifier
# ---------------------------------------------------------------------------

def _fused_dgn_kernel(x_ref, a_ref, w_in_ref, b_in_ref,
                      w_lyr_ref, b_lyr_ref, w_cls_ref, b_cls_ref,
                      h_all_ref, y_ref, h_scr, *, n_layers, act_fun):
    # --- input_lin + activation (bf16 matmul, f32 accumulate/epilogue) ---
    y = jnp.dot(x_ref[...], w_in_ref[...], preferred_element_type=jnp.float32)
    h = _act(y + b_in_ref[...], act_fun)
    h_scr[...] = h.astype(h_scr.dtype)          # bf16 resident H in VMEM

    a = a_ref[...]                               # bf16 [Np, Np], loaded once

    # --- conv layers (unrolled: n_layers is static and small) ---
    for i in range(n_layers):
        # H @ W computed once per layer, then A @ (HW)
        hw = jnp.dot(h_scr[...], w_lyr_ref[i],
                     preferred_element_type=jnp.float32)
        y = jnp.dot(a, hw.astype(a.dtype),
                    preferred_element_type=jnp.float32)
        h = _act(y + b_lyr_ref[i], act_fun)      # f32 epilogue
        h_all_ref[i] = h.astype(h_all_ref.dtype)  # h_list entry (f32 output)
        h_scr[...] = h.astype(h_scr.dtype)       # stays on-chip for next layer

    # --- classifier head (no activation) ---
    y = jnp.dot(h_scr[...], w_cls_ref[...], preferred_element_type=jnp.float32)
    y_ref[...] = (y + b_cls_ref[...]).astype(y_ref.dtype)


def _full_spec(shape):
    return pl.BlockSpec(shape, lambda: (0,) * len(shape))


def _pad2(x, rows, cols, dtype):
    out = jnp.zeros((rows, cols), dtype)
    return out.at[:x.shape[0], :x.shape[1]].set(x.astype(dtype))


@functools.partial(jax.jit, static_argnames=("act_fun",))
def fused_dgn_forward(params, x, a_norm, act_fun="relu"):
    """Single pallas_call implementing BaseDGN.forward (eval mode).

    Returns (h_list, y_pred_list, e_w_list) like the PyTorch module.
    """
    n, c_in = x.shape
    hidden = params["input_lin"]["w"].shape[1]
    c_out = params["classifier"]["w"].shape[1]
    n_layers = len(params["layers"])
    assert n_layers > 0
    for lp in params["layers"]:
        assert lp["w"].shape == (hidden, hidden)

    # Padded (lane-dense) shapes
    n_p = _round_up(n, SUBLANE)
    cin_p = _round_up(c_in, LANE)
    h_p = _round_up(hidden, LANE)
    cout_p = _round_up(c_out, LANE)

    # Matmul operands in bf16, biases in f32.  Zero padding stays exactly
    # zero through the padded output columns (act(0)=0 for relu/tanh/elu and
    # padded W rows/cols are zero), and padded rows of A are zero so valid
    # rows never pick up contributions from padded node rows.
    x_p = _pad2(x, n_p, cin_p, jnp.bfloat16)
    a_p = _pad2(a_norm, n_p, n_p, jnp.bfloat16)
    w_in_p = _pad2(params["input_lin"]["w"], cin_p, h_p, jnp.bfloat16)
    b_in_p = _pad2(params["input_lin"]["b"], 1, h_p, jnp.float32)
    w_lyr_p = jnp.stack([_pad2(lp["w"], h_p, h_p, jnp.bfloat16)
                         for lp in params["layers"]])          # (L, h_p, h_p)
    b_lyr_p = jnp.stack([_pad2(lp["b"], 1, h_p, jnp.float32)
                         for lp in params["layers"]])          # (L, 1, h_p)
    w_cls_p = _pad2(params["classifier"]["w"], h_p, cout_p, jnp.bfloat16)
    b_cls_p = _pad2(params["classifier"]["b"], 1, cout_p, jnp.float32)

    kernel = functools.partial(_fused_dgn_kernel,
                               n_layers=n_layers, act_fun=act_fun)

    h_all, y_pred_p = pl.pallas_call(
        kernel,
        out_shape=(
            jax.ShapeDtypeStruct((n_layers, n_p, h_p), jnp.float32),
            jax.ShapeDtypeStruct((n_p, cout_p), jnp.float32),
        ),
        in_specs=[
            _full_spec(x_p.shape), _full_spec(a_p.shape),
            _full_spec(w_in_p.shape), _full_spec(b_in_p.shape),
            _full_spec(w_lyr_p.shape), _full_spec(b_lyr_p.shape),
            _full_spec(w_cls_p.shape), _full_spec(b_cls_p.shape),
        ],
        out_specs=(
            _full_spec((n_layers, n_p, h_p)),
            _full_spec((n_p, cout_p)),
        ),
        scratch_shapes=[pltpu.VMEM((n_p, h_p), jnp.bfloat16)],
    )(x_p, a_p, w_in_p, b_in_p, w_lyr_p, b_lyr_p, w_cls_p, b_cls_p)

    # Slice the zero padding off outside the kernel.
    h_list = [h_all[i, :n, :hidden] for i in range(n_layers)]
    y_pred_list = [y_pred_p[:n, :c_out]]
    e_w_list = [None]                       # __extract_conv_results__ -> None
    # TODO(synk): skip_connections / classifier_at_each_layer branches of the
    # abstract base are not exercised here (defaults False).
    return h_list, y_pred_list, e_w_list


# ---------------------------------------------------------------------------
# Parameters + graph glue (plain JAX)
# ---------------------------------------------------------------------------

def init_base_dgn_params(key, n_layers, num_in, num_hidden, num_out):
    """Deterministic init mimicking nn.Linear default (uniform +- 1/sqrt(fan_in))."""
    params = {}
    key, k_w, k_b = jax.random.split(key, 3)
    lim = 1.0 / jnp.sqrt(num_in)
    params["input_lin"] = {
        "w": jax.random.uniform(k_w, (num_in, num_hidden), jnp.float32, -lim, lim),
        "b": jax.random.uniform(k_b, (1, num_hidden), jnp.float32, -lim, lim),
    }
    params["layers"] = []
    in_size = num_hidden
    for _ in range(n_layers):
        key, k_w, k_b = jax.random.split(key, 3)
        lim = 1.0 / jnp.sqrt(in_size)
        params["layers"].append({
            "w": jax.random.uniform(k_w, (in_size, num_hidden), jnp.float32, -lim, lim),
            "b": jax.random.uniform(k_b, (1, num_hidden), jnp.float32, -lim, lim),
        })
        in_size = num_hidden
    key, k_w, k_b = jax.random.split(key, 3)
    lim = 1.0 / jnp.sqrt(in_size)
    params["classifier"] = {
        "w": jax.random.uniform(k_w, (in_size, num_out), jnp.float32, -lim, lim),
        "b": jax.random.uniform(k_b, (1, num_out), jnp.float32, -lim, lim),
    }
    return params


def normalized_adjacency(edge_index, num_nodes):
    """Dense sym-normalized adjacency with self loops from edge_index [2, E]."""
    src, dst = edge_index
    a = jnp.zeros((num_nodes, num_nodes), jnp.float32).at[src, dst].set(1.0)
    # set (not add) the diagonal so pre-existing self loops don't become 2.0
    diag = jnp.arange(num_nodes)
    a = a.at[diag, diag].set(1.0)
    deg = jnp.sum(a, axis=1)
    d_inv_sqrt = 1.0 / jnp.sqrt(jnp.maximum(deg, 1e-12))
    return a * d_inv_sqrt[:, None] * d_inv_sqrt[None, :]


# ---------------------------------------------------------------------------
# Pure-JAX f32 reference (for tolerance validation of the bf16 kernel)
# ---------------------------------------------------------------------------

def base_dgn_forward_ref(params, x, a_norm, act_fun="relu"):
    act = lambda y: _act(y, act_fun)
    h = act(x @ params["input_lin"]["w"] + params["input_lin"]["b"])
    h_list = []
    for lp in params["layers"]:
        h = act(a_norm @ (h @ lp["w"]) + lp["b"])
        h_list.append(h)
    y = h_list[-1] @ params["classifier"]["w"] + params["classifier"]["b"]
    return h_list, [y], [None]


# ---------------------------------------------------------------------------
# Demo
# ---------------------------------------------------------------------------

if __name__ == "__main__":
    N_NODES = 64
    NUM_IN = 16
    NUM_HIDDEN = 32
    NUM_OUT = 8
    N_LAYERS = 2

    key = jax.random.PRNGKey(0)
    k_x, k_params = jax.random.split(key)

    # Node features [N, C_in]
    x = jax.random.normal(k_x, (N_NODES, NUM_IN), jnp.float32)

    # Ring graph edge_index [2, E] (both directions)
    idx = jnp.arange(N_NODES)
    src = jnp.concatenate([idx, (idx + 1) % N_NODES])
    dst = jnp.concatenate([(idx + 1) % N_NODES, idx])
    edge_index = jnp.stack([src, dst])
    a_norm = normalized_adjacency(edge_index, N_NODES)

    params = init_base_dgn_params(k_params, N_LAYERS, NUM_IN, NUM_HIDDEN, NUM_OUT)

    h_list, y_pred_list, e_w_list = fused_dgn_forward(params, x, a_norm,
                                                      act_fun="relu")
    jax.block_until_ready(h_list)
    jax.block_until_ready(y_pred_list)

    # Shape checks (same contract as BaseDGN.forward)
    assert len(h_list) == N_LAYERS
    assert all(h.shape == (N_NODES, NUM_HIDDEN) for h in h_list)
    assert y_pred_list[0].shape == (N_NODES, NUM_OUT)
    assert e_w_list == [None]

    # Numerics vs f32 pure-JAX reference (bf16 matmuls + f32 accumulation)
    h_ref, y_ref, _ = base_dgn_forward_ref(params, x, a_norm, act_fun="relu")
    for h_k, h_r in zip(h_list, h_ref):
        assert jnp.max(jnp.abs(h_k - h_r)) < 1e-1
    assert jnp.max(jnp.abs(y_pred_list[0] - y_ref[0])) < 1e-1

    print("KERNEL_OK")
</pallas_src>

<mosaic_0001>
module attributes {stable_mosaic.version = 11 : i64} {
  func.func @_fused_dgn_kernel(%arg0: memref<64x128xbf16, #tpu.memory_space<vmem>>, %arg1: memref<64x64xbf16, #tpu.memory_space<vmem>>, %arg2: memref<128x128xbf16, #tpu.memory_space<vmem>>, %arg3: memref<1x128xf32, #tpu.memory_space<vmem>>, %arg4: memref<2x128x128xbf16, #tpu.memory_space<vmem>>, %arg5: memref<2x1x128xf32, #tpu.memory_space<vmem>>, %arg6: memref<128x128xbf16, #tpu.memory_space<vmem>>, %arg7: memref<1x128xf32, #tpu.memory_space<vmem>>, %arg8: memref<2x64x128xf32, #tpu.memory_space<vmem>>, %arg9: memref<64x128xf32, #tpu.memory_space<vmem>>, %arg10: memref<64x128xbf16, #tpu.memory_space<vmem>>) attributes {dimension_semantics = [], scalar_prefetch = 0 : i64, scratch_operands = 1 : i64, tpu.core_type = #tpu.core_type<tc>} {
    %c0 = arith.constant 0 : index
    %c0_0 = arith.constant 0 : index
    %0 = vector.load %arg0[%c0, %c0_0] : memref<64x128xbf16, #tpu.memory_space<vmem>>, vector<64x128xbf16>
    %c0_1 = arith.constant 0 : index
    %c0_2 = arith.constant 0 : index
    %1 = vector.load %arg2[%c0_1, %c0_2] : memref<128x128xbf16, #tpu.memory_space<vmem>>, vector<128x128xbf16>
    %cst = arith.constant dense<0.000000e+00> : vector<64x128xf32>
    %2 = tpu.matmul %0, %1, %cst {dimension_numbers = #tpu.dot_dimension_numbers<[1], [0], [0], [1], [0, 0, 1, 1], [], []>} : vector<64x128xbf16>, vector<128x128xbf16>, vector<64x128xf32> -> vector<64x128xf32>
    %c0_3 = arith.constant 0 : index
    %c0_4 = arith.constant 0 : index
    %3 = vector.load %arg3[%c0_3, %c0_4] : memref<1x128xf32, #tpu.memory_space<vmem>>, vector<1x128xf32>
    %4 = vector.broadcast %3 : vector<1x128xf32> to vector<64x128xf32>
    %5 = arith.addf %2, %4 : vector<64x128xf32>
    %cst_5 = arith.constant 0.000000e+00 : f32
    %6 = vector.broadcast %cst_5 : f32 to vector<64x128xf32>
    %7 = arith.maximumf %5, %6 : vector<64x128xf32>
    %8 = arith.truncf %7 : vector<64x128xf32> to vector<64x128xbf16>
    %c0_6 = arith.constant 0 : index
    %c0_7 = arith.constant 0 : index
    %9 = vector.load %arg10[%c0_6, %c0_7] : memref<64x128xbf16, #tpu.memory_space<vmem>>, vector<64x128xbf16>
    tpu.vector_store %arg10[%c0_6, %c0_7], %8 {strides = array<i32>} : memref<64x128xbf16, #tpu.memory_space<vmem>>, vector<64x128xbf16>,
    %c0_8 = arith.constant 0 : index
    %c0_9 = arith.constant 0 : index
    %10 = vector.load %arg1[%c0_8, %c0_9] : memref<64x64xbf16, #tpu.memory_space<vmem>>, vector<64x64xbf16>
    %c0_10 = arith.constant 0 : index
    %c0_11 = arith.constant 0 : index
    %11 = vector.load %arg10[%c0_10, %c0_11] : memref<64x128xbf16, #tpu.memory_space<vmem>>, vector<64x128xbf16>
    %c0_12 = arith.constant 0 : index
    %c0_13 = arith.constant 0 : index
    %c0_14 = arith.constant 0 : index
    %12 = vector.load %arg4[%c0_12, %c0_13, %c0_14] : memref<2x128x128xbf16, #tpu.memory_space<vmem>>, vector<1x128x128xbf16>
    %13 = vector.shape_cast %12 : vector<1x128x128xbf16> to vector<128x128xbf16>
    %cst_15 = arith.constant dense<0.000000e+00> : vector<64x128xf32>
    %14 = tpu.matmul %11, %13, %cst_15 {dimension_numbers = #tpu.dot_dimension_numbers<[1], [0], [0], [1], [0, 0, 1, 1], [], []>} : vector<64x128xbf16>, vector<128x128xbf16>, vector<64x128xf32> -> vector<64x128xf32>
    %15 = arith.truncf %14 : vector<64x128xf32> to vector<64x128xbf16>
    %cst_16 = arith.constant dense<0.000000e+00> : vector<64x128xf32>
    %16 = tpu.matmul %10, %15, %cst_16 {dimension_numbers = #tpu.dot_dimension_numbers<[1], [0], [0], [1], [0, 0, 1, 1], [], []>} : vector<64x64xbf16>, vector<64x128xbf16>, vector<64x128xf32> -> vector<64x128xf32>
    %c0_17 = arith.constant 0 : index
    %c0_18 = arith.constant 0 : index
    %c0_19 = arith.constant 0 : index
    %17 = vector.load %arg5[%c0_17, %c0_18, %c0_19] : memref<2x1x128xf32, #tpu.memory_space<vmem>>, vector<1x1x128xf32>
    %18 = vector.shape_cast %17 : vector<1x1x128xf32> to vector<1x128xf32>
    %19 = vector.broadcast %18 : vector<1x128xf32> to vector<64x128xf32>
    %20 = arith.addf %16, %19 : vector<64x128xf32>
    %cst_20 = arith.constant 0.000000e+00 : f32
    %21 = vector.broadcast %cst_20 : f32 to vector<64x128xf32>
    %22 = arith.maximumf %20, %21 : vector<64x128xf32>
    %c0_21 = arith.constant 0 : index
    %c0_22 = arith.constant 0 : index
    %c0_23 = arith.constant 0 : index
    %23 = vector.load %arg8[%c0_21, %c0_22, %c0_23] : memref<2x64x128xf32, #tpu.memory_space<vmem>>, vector<1x64x128xf32>
    %24 = vector.shape_cast %23 : vector<1x64x128xf32> to vector<64x128xf32>
    %25 = vector.shape_cast %22 : vector<64x128xf32> to vector<1x64x128xf32>
    tpu.vector_store %arg8[%c0_21, %c0_22, %c0_23], %25 {strides = array<i32>} : memref<2x64x128xf32, #tpu.memory_space<vmem>>, vector<1x64x128xf32>,
    %26 = arith.truncf %22 : vector<64x128xf32> to vector<64x128xbf16>
    %c0_24 = arith.constant 0 : index
    %c0_25 = arith.constant 0 : index
    %27 = vector.load %arg10[%c0_24, %c0_25] : memref<64x128xbf16, #tpu.memory_space<vmem>>, vector<64x128xbf16>
    tpu.vector_store %arg10[%c0_24, %c0_25], %26 {strides = array<i32>} : memref<64x128xbf16, #tpu.memory_space<vmem>>, vector<64x128xbf16>,
    %c0_26 = arith.constant 0 : index
    %c0_27 = arith.constant 0 : index
    %28 = vector.load %arg10[%c0_26, %c0_27] : memref<64x128xbf16, #tpu.memory_space<vmem>>, vector<64x128xbf16>
    %c1 = arith.constant 1 : index
    %c0_28 = arith.constant 0 : index
    %c0_29 = arith.constant 0 : index
    %29 = vector.load %arg4[%c1, %c0_28, %c0_29] : memref<2x128x128xbf16, #tpu.memory_space<vmem>>, vector<1x128x128xbf16>
    %30 = vector.shape_cast %29 : vector<1x128x128xbf16> to vector<128x128xbf16>
    %cst_30 = arith.constant dense<0.000000e+00> : vector<64x128xf32>
    %31 = tpu.matmul %28, %30, %cst_30 {dimension_numbers = #tpu.dot_dimension_numbers<[1], [0], [0], [1], [0, 0, 1, 1], [], []>} : vector<64x128xbf16>, vector<128x128xbf16>, vector<64x128xf32> -> vector<64x128xf32>
    %32 = arith.truncf %31 : vector<64x128xf32> to vector<64x128xbf16>
    %cst_31 = arith.constant dense<0.000000e+00> : vector<64x128xf32>
    %33 = tpu.matmul %10, %32, %cst_31 {dimension_numbers = #tpu.dot_dimension_numbers<[1], [0], [0], [1], [0, 0, 1, 1], [], []>} : vector<64x64xbf16>, vector<64x128xbf16>, vector<64x128xf32> -> vector<64x128xf32>
    %c1_32 = arith.constant 1 : index
    %c0_33 = arith.constant 0 : index
    %c0_34 = arith.constant 0 : index
    %34 = vector.load %arg5[%c1_32, %c0_33, %c0_34] : memref<2x1x128xf32, #tpu.memory_space<vmem>>, vector<1x1x128xf32>
    %35 = vector.shape_cast %34 : vector<1x1x128xf32> to vector<1x128xf32>
    %36 = vector.broadcast %35 : vector<1x128xf32> to vector<64x128xf32>
    %37 = arith.addf %33, %36 : vector<64x128xf32>
    %cst_35 = arith.constant 0.000000e+00 : f32
    %38 = vector.broadcast %cst_35 : f32 to vector<64x128xf32>
    %39 = arith.maximumf %37, %38 : vector<64x128xf32>
    %c1_36 = arith.constant 1 : index
    %c0_37 = arith.constant 0 : index
    %c0_38 = arith.constant 0 : index
    %40 = vector.load %arg8[%c1_36, %c0_37, %c0_38] : memref<2x64x128xf32, #tpu.memory_space<vmem>>, vector<1x64x128xf32>
    %41 = vector.shape_cast %40 : vector<1x64x128xf32> to vector<64x128xf32>
    %42 = vector.shape_cast %39 : vector<64x128xf32> to vector<1x64x128xf32>
    tpu.vector_store %arg8[%c1_36, %c0_37, %c0_38], %42 {strides = array<i32>} : memref<2x64x128xf32, #tpu.memory_space<vmem>>, vector<1x64x128xf32>,
    %43 = arith.truncf %39 : vector<64x128xf32> to vector<64x128xbf16>
    %c0_39 = arith.constant 0 : index
    %c0_40 = arith.constant 0 : index
    %44 = vector.load %arg10[%c0_39, %c0_40] : memref<64x128xbf16, #tpu.memory_space<vmem>>, vector<64x128xbf16>
    tpu.vector_store %arg10[%c0_39, %c0_40], %43 {strides = array<i32>} : memref<64x128xbf16, #tpu.memory_space<vmem>>, vector<64x128xbf16>,
    %c0_41 = arith.constant 0 : index
    %c0_42 = arith.constant 0 : index
    %45 = vector.load %arg10[%c0_41, %c0_42] : memref<64x128xbf16, #tpu.memory_space<vmem>>, vector<64x128xbf16>
    %c0_43 = arith.constant 0 : index
    %c0_44 = arith.constant 0 : index
    %46 = vector.load %arg6[%c0_43, %c0_44] : memref<128x128xbf16, #tpu.memory_space<vmem>>, vector<128x128xbf16>
    %cst_45 = arith.constant dense<0.000000e+00> : vector<64x128xf32>
    %47 = tpu.matmul %45, %46, %cst_45 {dimension_numbers = #tpu.dot_dimension_numbers<[1], [0], [0], [1], [0, 0, 1, 1], [], []>} : vector<64x128xbf16>, vector<128x128xbf16>, vector<64x128xf32> -> vector<64x128xf32>
    %c0_46 = arith.constant 0 : index
    %c0_47 = arith.constant 0 : index
    %48 = vector.load %arg7[%c0_46, %c0_47] : memref<1x128xf32, #tpu.memory_space<vmem>>, vector<1x128xf32>
    %49 = vector.broadcast %48 : vector<1x128xf32> to vector<64x128xf32>
    %50 = arith.addf %47, %49 : vector<64x128xf32>
    %c0_48 = arith.constant 0 : index
    %c0_49 = arith.constant 0 : index
    %51 = vector.load %arg9[%c0_48, %c0_49] : memref<64x128xf32, #tpu.memory_space<vmem>>, vector<64x128xf32>
    tpu.vector_store %arg9[%c0_48, %c0_49], %50 {strides = array<i32>} : memref<64x128xf32, #tpu.memory_space<vmem>>, vector<64x128xf32>,
    return
  }
}

</mosaic_0001>

<llo_original>
// kernel: fused_dgn_forward.1
$region0: #{fused_dgn_forward.1}
  #allocation0 [shape = 'u32[]', space=smem, size = 0x4, offset = 0x4, fixed_abs, tag = 'smem constant byte address 0x4 - core index']
  #allocation1 [shape = 'u32[144,128]{1,0:T(1,128)}', space=vmem, size = 0x12000, scoped, tag = 'internal scratch']
  #allocation2 [shape = 'bf16[64,128]{1,0:T(16,128)(2,1)}', space=vmem, size = 0x4000, scoped, tag = 'scratch operand']
  %s0 = inlined_call_operand.vmem [shape: bf16[64,128], index: 0, kind: input, shape index: {}]
  %s1 = inlined_call_operand.vmem [shape: bf16[64,64], index: 1, kind: input, shape index: {}]
  %s2 = inlined_call_operand.vmem [shape: bf16[128,128], index: 2, kind: input, shape index: {}]
  %s3 = inlined_call_operand.vmem [shape: f32[1,128], index: 3, kind: input, shape index: {}]
  %s4 = inlined_call_operand.vmem [shape: bf16[2,128,128], index: 4, kind: input, shape index: {}]
  %s5 = inlined_call_operand.vmem [shape: f32[2,1,128], index: 5, kind: input, shape index: {}]
  %s6 = inlined_call_operand.vmem [shape: bf16[128,128], index: 6, kind: input, shape index: {}]
  %s7 = inlined_call_operand.vmem [shape: f32[1,128], index: 7, kind: input, shape index: {}]
  %s8 = inlined_call_operand.vmem [shape: f32[2,64,128], index: 8, kind: output, shape index: {0}]
  %s9 = inlined_call_operand.vmem [shape: f32[64,128], index: 9, kind: output, shape index: {1}]
  %10 = xla_tuple %s8, %s9
  %s11 = sld [smem:[#allocation0]]
  $region50: #{fused_dgn_forward.1} parent=0
    _
  %s13 = ssub.s32 1, %s11
  %s14 = scalar_select 0, %s13, %s11
  // Predicated region
  $region2: #{fused_dgn_forward.1} parent=0 // pred_check
    _
  $region3: #{fused_dgn_forward.1} parent=0 // pred_check_branch
    %16 = sbr.rel (0) target = $region5
  $region4: #{fused_dgn_forward.1} parent=0 // pred_region
    _
  $region5: #{fused_dgn_forward.1} parent=0 // pred_fallthru
    _
  // Predicated region
  $region6: #{fused_dgn_forward.1} parent=0 // pred_check
    _
  $region7: #{fused_dgn_forward.1} parent=0 // pred_check_branch
    %18 = sbr.rel (0) target = $region9
  $region8: #{fused_dgn_forward.1} parent=0 // pred_region
    _
  $region9: #{fused_dgn_forward.1} parent=0 // pred_fallthru
    _
  // Predicated region
  $region10: #{fused_dgn_forward.1} parent=0 // pred_check
    _
  $region11: #{fused_dgn_forward.1} parent=0 // pred_check_branch
    %20 = sbr.rel (0) target = $region13
  $region12: #{fused_dgn_forward.1} parent=0 // pred_region
    _
  $region13: #{fused_dgn_forward.1} parent=0 // pred_fallthru
    _
  // Predicated region
  $region14: #{fused_dgn_forward.1} parent=0 // pred_check
    _
  $region15: #{fused_dgn_forward.1} parent=0 // pred_check_branch
    %22 = sbr.rel (0) target = $region17
  $region16: #{fused_dgn_forward.1} parent=0 // pred_region
    _
  $region17: #{fused_dgn_forward.1} parent=0 // pred_fallthru
    _
  // Predicated region
  $region18: #{fused_dgn_forward.1} parent=0 // pred_check
    _
  $region19: #{fused_dgn_forward.1} parent=0 // pred_check_branch
    %24 = sbr.rel (0) target = $region21
  $region20: #{fused_dgn_forward.1} parent=0 // pred_region
    _
  $region21: #{fused_dgn_forward.1} parent=0 // pred_fallthru
    _
  // Predicated region
  $region22: #{fused_dgn_forward.1} parent=0 // pred_check
    _
  $region23: #{fused_dgn_forward.1} parent=0 // pred_check_branch
    %26 = sbr.rel (0) target = $region25
  $region24: #{fused_dgn_forward.1} parent=0 // pred_region
    _
  $region25: #{fused_dgn_forward.1} parent=0 // pred_fallthru
    _
  // Predicated region
  $region26: #{fused_dgn_forward.1} parent=0 // pred_check
    _
  $region27: #{fused_dgn_forward.1} parent=0 // pred_check_branch
    %28 = sbr.rel (0) target = $region29
  $region28: #{fused_dgn_forward.1} parent=0 // pred_region
    _
  $region29: #{fused_dgn_forward.1} parent=0 // pred_fallthru
    _
  // Predicated region
  $region30: #{fused_dgn_forward.1} parent=0 // pred_check
    _
  $region31: #{fused_dgn_forward.1} parent=0 // pred_check_branch
    %30 = sbr.rel (0) target = $region33
  $region32: #{fused_dgn_forward.1} parent=0 // pred_region
    _
  $region33: #{fused_dgn_forward.1} parent=0 // pred_fallthru
    _
  %v32 = vld [vmem:[%s0] sm:$0xf]
  %v33 = vld [vmem:[%s0 + $0x4] sm:$0xf]
  %v34 = vld [vmem:[%s0 + $0x8] sm:$0xf]
  %v35 = vld [vmem:[%s0 + $0xc] sm:$0xf]
  %v36 = vld [vmem:[%s0 + $0x10] sm:$0xf]
  %v37 = vld [vmem:[%s0 + $0x14] sm:$0xf]
  %v38 = vld [vmem:[%s0 + $0x18] sm:$0xf]
  %v39 = vld [vmem:[%s0 + $0x1c] sm:$0xf]
  %v40 = vld [vmem:[%s2] sm:$0xf]
  %v41 = vld [vmem:[%s2 + $0x4] sm:$0xf]
  %v42 = vld [vmem:[%s2 + $0x8] sm:$0xf]
  %v43 = vld [vmem:[%s2 + $0xc] sm:$0xf]
  %v44 = vld [vmem:[%s2 + $0x10] sm:$0xf]
  %v45 = vld [vmem:[%s2 + $0x14] sm:$0xf]
  %v46 = vld [vmem:[%s2 + $0x18] sm:$0xf]
  %v47 = vld [vmem:[%s2 + $0x1c] sm:$0xf]
  %v48 = vld [vmem:[%s2 + $0x20] sm:$0xf]
  %v49 = vld [vmem:[%s2 + $0x24] sm:$0xf]
  %v50 = vld [vmem:[%s2 + $0x28] sm:$0xf]
  %v51 = vld [vmem:[%s2 + $0x2c] sm:$0xf]
  %v52 = vld [vmem:[%s2 + $0x30] sm:$0xf]
  %v53 = vld [vmem:[%s2 + $0x34] sm:$0xf]
  %v54 = vld [vmem:[%s2 + $0x38] sm:$0xf]
  %v55 = vld [vmem:[%s2 + $0x3c] sm:$0xf]
  %v56 = vld [vmem:[%s3] sm:$0x1]
  %v58 = vlaneseq
  %v59 = vshrl.u32 %v58, 7
  %v60 = vsub.s32 0, %v59
  %v61 = vrot.slane %v56, %v60
  %v71 = vunpack.c.l.b16 %v32
  %v72 = vunpack.c.l.b16 %v33
  %v73 = vunpack.c.l.b16 %v34
  %v74 = vunpack.c.l.b16 %v35
  %v75 = vunpack.c.l.b16 %v36
  %v76 = vunpack.c.l.b16 %v37
  %v77 = vunpack.c.l.b16 %v38
  %v78 = vunpack.c.l.b16 %v39
  %v79 = vpack.c.b16 %v72, %v71
  %v80 = vpack.c.b16 %v74, %v73
  %v81 = vpack.c.b16 %v76, %v75
  %v82 = vpack.c.b16 %v78, %v77
  %v103 = vunpack.c.l.b16 %v40
  %v104 = vunpack.c.l.b16 %v41
  %v105 = vunpack.c.l.b16 %v42
  %v106 = vunpack.c.l.b16 %v43
  %v107 = vunpack.c.l.b16 %v44
  %v108 = vunpack.c.l.b16 %v45
  %v109 = vunpack.c.l.b16 %v46
  %v110 = vunpack.c.l.b16 %v47
  %v111 = vunpack.c.l.b16 %v48
  %v112 = vunpack.c.l.b16 %v49
  %v113 = vunpack.c.l.b16 %v50
  %v114 = vunpack.c.l.b16 %v51
  %v115 = vunpack.c.l.b16 %v52
  %v116 = vunpack.c.l.b16 %v53
  %v117 = vunpack.c.l.b16 %v54
  %v118 = vunpack.c.l.b16 %v55
  %v119 = vpack.c.b16 %v104, %v103
  %v120 = vpack.c.b16 %v106, %v105
  %v121 = vpack.c.b16 %v108, %v107
  %v122 = vpack.c.b16 %v110, %v109
  %v123 = vpack.c.b16 %v112, %v111
  %v124 = vpack.c.b16 %v114, %v113
  %v125 = vpack.c.b16 %v116, %v115
  %v126 = vpack.c.b16 %v118, %v117
  %135 = vmatprep.subr.bf16.mxu0 0
  %136 = vmatpush1.bf16.msra.mxu0 %v119
  %137 = vmatprep.subr.bf16.mxu0 0
  %138 = vmatpush1.bf16.msra.mxu0 %v120
  %139 = vmatprep.subr.bf16.mxu0 0
  %140 = vmatpush1.bf16.msra.mxu0 %v121
  %141 = vmatprep.subr.bf16.mxu0 0
  %142 = vmatpush1.bf16.msra.mxu0 %v122
  %143 = vmatprep.subr.bf16.mxu0 0
  %144 = vmatpush1.bf16.msra.mxu0 %v123
  %145 = vmatprep.subr.bf16.mxu0 0
  %146 = vmatpush1.bf16.msra.mxu0 %v124
  %147 = vmatprep.subr.bf16.mxu0 0
  %148 = vmatpush1.bf16.msra.mxu0 %v125
  %149 = vmatprep.subr.bf16.mxu0 0
  %150 = vmatpush1.bf16.msra.mxu0 %v126
  %151 = vmatprep.subr.bf16.mxu0 0
  %152 = vmatpush1.bf16.msra.mxu0 0
  %153 = vmatprep.subr.bf16.mxu0 0
  %154 = vmatpush1.bf16.msra.mxu0 0
  %155 = vmatprep.subr.bf16.mxu0 0
  %156 = vmatpush1.bf16.msra.mxu0 0
  %157 = vmatprep.subr.bf16.mxu0 0
  %158 = vmatpush1.bf16.msra.mxu0 0
  %159 = vmatprep.subr.bf16.mxu0 0
  %160 = vmatpush1.bf16.msra.mxu0 0
  %161 = vmatprep.subr.bf16.mxu0 0
  %162 = vmatpush1.bf16.msra.mxu0 0
  %163 = vmatprep.subr.bf16.mxu0 0
  %164 = vmatpush1.bf16.msra.mxu0 0
  %165 = vmatprep.subr.bf16.mxu0 0
  %166 = vmatpush1.bf16.msra.mxu0 0
  %167 = vmatprep.mubr.bf16.mxu0 0
  %168 = vmatmul.mubr.bf16.gmra.mrb[0].mxu0 %v79
  %v169 = vpop.f32.mrb[0].mxu0
  %v170 = vadd.f32 %v61, %v169
  %v171 = vpop.f32.mrb[0].mxu0
  %v172 = vpop.f32.mrb[0].mxu0
  %v173 = vadd.f32 %v61, %v172
  %v174 = vpop.f32.mrb[0].mxu0
  %175 = vmatprep.mubr.bf16.mxu0 0
  %176 = vmatmul.mubr.bf16.gmra.mrb[0].mxu0 %v80
  %v177 = vpop.f32.mrb[0].mxu0
  %v178 = vadd.f32 %v61, %v177
  %v179 = vpop.f32.mrb[0].mxu0
  %v180 = vpop.f32.mrb[0].mxu0
  %v181 = vadd.f32 %v61, %v180
  %v182 = vpop.f32.mrb[0].mxu0
  %183 = vmatprep.mubr.bf16.mxu0 0
  %184 = vmatmul.mubr.bf16.gmra.mrb[0].mxu0 %v81
  %v185 = vpop.f32.mrb[0].mxu0
  %v186 = vadd.f32 %v61, %v185
  %v187 = vpop.f32.mrb[0].mxu0
  %v188 = vpop.f32.mrb[0].mxu0
  %v189 = vadd.f32 %v61, %v188
  %v190 = vpop.f32.mrb[0].mxu0
  %191 = vmatprep.mubr.bf16.mxu0 0
  %192 = vmatmul.mubr.bf16.gmra.mrb[0].mxu0 %v82
  %v193 = vpop.f32.mrb[0].mxu0
  %v194 = vadd.f32 %v61, %v193
  %v195 = vpop.f32.mrb[0].mxu0
  %v196 = vpop.f32.mrb[0].mxu0
  %v197 = vadd.f32 %v61, %v196
  %v198 = vpop.f32.mrb[0].mxu0
  %199 = vdwg.mxu0
  %v200 = vmax.f32 %v170, 0.0
  %v201 = vmax.f32 %v173, 0.0
  %v202 = vmax.f32 %v178, 0.0
  %v203 = vmax.f32 %v181, 0.0
  %v204 = vmax.f32 %v186, 0.0
  %v205 = vmax.f32 %v189, 0.0
  %v206 = vmax.f32 %v194, 0.0
  %v207 = vmax.f32 %v197, 0.0
  %v208 = vpack.c.bf16 %v201, %v200
  %v209 = vpack.c.bf16 %v203, %v202
  %v210 = vpack.c.bf16 %v205, %v204
  %v211 = vpack.c.bf16 %v207, %v206
  %212 = vst [vmem:[#allocation2] sm:$0xff] %v208
  %213 = vst [vmem:[#allocation2 + $0x8] sm:$0xff] %v209
  %214 = vst [vmem:[#allocation2 + $0x10] sm:$0xff] %v210
  %215 = vst [vmem:[#allocation2 + $0x18] sm:$0xff] %v211
  %v216 = vld [vmem:[%s1] sm:$0xf]
  %v217 = vld [vmem:[%s1 + $0x4] sm:$0xf]
  %v218 = vld [vmem:[%s1 + $0x8] sm:$0xf]
  %v219 = vld [vmem:[%s1 + $0xc] sm:$0xf]
  %v220 = vld [vmem:[%s1 + $0x10] sm:$0xf]
  %v221 = vld [vmem:[%s1 + $0x14] sm:$0xf]
  %v222 = vld [vmem:[%s1 + $0x18] sm:$0xf]
  %v223 = vld [vmem:[%s1 + $0x1c] sm:$0xf]
  %v224 = vld [vmem:[#allocation2] sm:$0xff]
  %v225 = vld [vmem:[#allocation2 + $0x8] sm:$0xff]
  %v226 = vld [vmem:[#allocation2 + $0x10] sm:$0xff]
  %v227 = vld [vmem:[#allocation2 + $0x18] sm:$0xff]
  %v228 = vld [vmem:[%s4] sm:$0xf]
  %v229 = vld [vmem:[%s4 + $0x4] sm:$0xf]
  %v230 = vld [vmem:[%s4 + $0x8] sm:$0xf]
  %v231 = vld [vmem:[%s4 + $0xc] sm:$0xf]
  %v232 = vld [vmem:[%s4 + $0x10] sm:$0xf]
  %v233 = vld [vmem:[%s4 + $0x14] sm:$0xf]
  %v234 = vld [vmem:[%s4 + $0x18] sm:$0xf]
  %v235 = vld [vmem:[%s4 + $0x1c] sm:$0xf]
  %v236 = vld [vmem:[%s4 + $0x20] sm:$0xf]
  %v237 = vld [vmem:[%s4 + $0x24] sm:$0xf]
  %v238 = vld [vmem:[%s4 + $0x28] sm:$0xf]
  %v239 = vld [vmem:[%s4 + $0x2c] sm:$0xf]
  %v240 = vld [vmem:[%s4 + $0x30] sm:$0xf]
  %v241 = vld [vmem:[%s4 + $0x34] sm:$0xf]
  %v242 = vld [vmem:[%s4 + $0x38] sm:$0xf]
  %v243 = vld [vmem:[%s4 + $0x3c] sm:$0xf]
  %v260 = vunpack.c.l.b16 %v228
  %v261 = vunpack.c.l.b16 %v229
  %v262 = vunpack.c.l.b16 %v230
  %v263 = vunpack.c.l.b16 %v231
  %v264 = vunpack.c.l.b16 %v232
  %v265 = vunpack.c.l.b16 %v233
  %v266 = vunpack.c.l.b16 %v234
  %v267 = vunpack.c.l.b16 %v235
  %v268 = vunpack.c.l.b16 %v236
  %v269 = vunpack.c.l.b16 %v237
  %v270 = vunpack.c.l.b16 %v238
  %v271 = vunpack.c.l.b16 %v239
  %v272 = vunpack.c.l.b16 %v240
  %v273 = vunpack.c.l.b16 %v241
  %v274 = vunpack.c.l.b16 %v242
  %v275 = vunpack.c.l.b16 %v243
  %v276 = vpack.c.b16 %v261, %v260
  %v277 = vpack.c.b16 %v263, %v262
  %v278 = vpack.c.b16 %v265, %v264
  %v279 = vpack.c.b16 %v267, %v266
  %v280 = vpack.c.b16 %v269, %v268
  %v281 = vpack.c.b16 %v271, %v270
  %v282 = vpack.c.b16 %v273, %v272
  %v283 = vpack.c.b16 %v275, %v274
  %292 = vmatprep.subr.bf16.mxu0 0
  %293 = vmatpush1.bf16.msra.mxu0 %v276
  %294 = vmatprep.subr.bf16.mxu0 0
  %295 = vmatpush1.bf16.msra.mxu0 %v277
  %296 = vmatprep.subr.bf16.mxu0 0
  %297 = vmatpush1.bf16.msra.mxu0 %v278
  %298 = vmatprep.subr.bf16.mxu0 0
  %299 = vmatpush1.bf16.msra.mxu0 %v279
  %300 = vmatprep.subr.bf16.mxu0 0
  %301 = vmatpush1.bf16.msra.mxu0 %v280
  %302 = vmatprep.subr.bf16.mxu0 0
  %303 = vmatpush1.bf16.msra.mxu0 %v281
  %304 = vmatprep.subr.bf16.mxu0 0
  %305 = vmatpush1.bf16.msra.mxu0 %v282
  %306 = vmatprep.subr.bf16.mxu0 0
  %307 = vmatpush1.bf16.msra.mxu0 %v283
  %308 = vmatprep.subr.bf16.mxu0 0
  %309 = vmatpush1.bf16.msra.mxu0 0
  %310 = vmatprep.subr.bf16.mxu0 0
  %311 = vmatpush1.bf16.msra.mxu0 0
  %312 = vmatprep.subr.bf16.mxu0 0
  %313 = vmatpush1.bf16.msra.mxu0 0
  %314 = vmatprep.subr.bf16.mxu0 0
  %315 = vmatpush1.bf16.msra.mxu0 0
  %316 = vmatprep.subr.bf16.mxu0 0
  %317 = vmatpush1.bf16.msra.mxu0 0
  %318 = vmatprep.subr.bf16.mxu0 0
  %319 = vmatpush1.bf16.msra.mxu0 0
  %320 = vmatprep.subr.bf16.mxu0 0
  %321 = vmatpush1.bf16.msra.mxu0 0
  %322 = vmatprep.subr.bf16.mxu0 0
  %323 = vmatpush1.bf16.msra.mxu0 0
  %324 = vmatprep.mubr.bf16.mxu0 0
  %325 = vmatmul.mubr.bf16.gmra.mrb[0].mxu0 %v224
  %v326 = vpop.f32.mrb[0].mxu0
  %v327 = vadd.f32 0.0, %v326
  %v328 = vpop.f32.mrb[0].mxu0
  %v329 = vpop.f32.mrb[0].mxu0
  %v330 = vadd.f32 0.0, %v329
  %v331 = vpop.f32.mrb[0].mxu0
  %332 = vmatprep.mubr.bf16.mxu0 0
  %333 = vmatmul.mubr.bf16.gmra.mrb[0].mxu0 %v225
  %v334 = vpop.f32.mrb[0].mxu0
  %v335 = vadd.f32 0.0, %v334
  %v336 = vpop.f32.mrb[0].mxu0
  %v337 = vpop.f32.mrb[0].mxu0
  %v338 = vadd.f32 0.0, %v337
  %v339 = vpop.f32.mrb[0].mxu0
  %340 = vmatprep.mubr.bf16.mxu0 0
  %341 = vmatmul.mubr.bf16.gmra.mrb[0].mxu0 %v226
  %v342 = vpop.f32.mrb[0].mxu0
  %v343 = vadd.f32 0.0, %v342
  %v344 = vpop.f32.mrb[0].mxu0
  %v345 = vpop.f32.mrb[0].mxu0
  %v346 = vadd.f32 0.0, %v345
  %v347 = vpop.f32.mrb[0].mxu0
  %348 = vmatprep.mubr.bf16.mxu0 0
  %349 = vmatmul.mubr.bf16.gmra.mrb[0].mxu0 %v227
  %v350 = vpop.f32.mrb[0].mxu0
  %v351 = vadd.f32 0.0, %v350
  %v352 = vpop.f32.mrb[0].mxu0
  %v353 = vpop.f32.mrb[0].mxu0
  %v354 = vadd.f32 0.0, %v353
  %v355 = vpop.f32.mrb[0].mxu0
  %356 = vdwg.mxu0
  %v357 = vpack.c.bf16 %v330, %v327
  %v358 = vpack.c.bf16 %v338, %v335
  %v359 = vpack.c.bf16 %v346, %v343
  %v360 = vpack.c.bf16 %v354, %v351
  %v361 = vld [vmem:[%s5] sm:$0x1]
  %v363 = vlaneseq
  %v364 = vshrl.u32 %v363, 7
  %v365 = vsub.s32 0, %v364
  %v366 = vrot.slane %v361, %v365
  %v376 = vunpack.c.l.b16 %v216
  %v377 = vunpack.c.l.b16 %v217
  %v378 = vunpack.c.l.b16 %v218
  %v379 = vunpack.c.l.b16 %v219
  %v380 = vunpack.c.l.b16 %v220
  %v381 = vunpack.c.l.b16 %v221
  %v382 = vunpack.c.l.b16 %v222
  %v383 = vunpack.c.l.b16 %v223
  %v384 = vpack.c.b16 %v377, %v376
  %v385 = vpack.c.b16 %v379, %v378
  %v386 = vpack.c.b16 %v381, %v380
  %v387 = vpack.c.b16 %v383, %v382
  %vm388 = vcmask 523264
  %v390 = vsel %vm388, %v384, 0
  %v393 = vsel %vm388, %v385, 0
  %v396 = vsel %vm388, %v386, 0
  %v399 = vsel %vm388, %v387, 0
  %401 = vmatprep.subr.bf16.mxu0 0
  %402 = vmatpush1.bf16.msra.mxu0 %v357
  %403 = vmatprep.subr.bf16.mxu0 0
  %404 = vmatpush1.bf16.msra.mxu0 %v358
  %405 = vmatprep.subr.bf16.mxu0 0
  %406 = vmatpush1.bf16.msra.mxu0 %v359
  %407 = vmatprep.subr.bf16.mxu0 0
  %408 = vmatpush1.bf16.msra.mxu0 %v360
  %409 = vmatprep.subr.bf16.mxu0 0
  %410 = vmatpush1.bf16.msra.mxu0 0
  %411 = vmatprep.subr.bf16.mxu0 0
  %412 = vmatpush1.bf16.msra.mxu0 0
  %413 = vmatprep.subr.bf16.mxu0 0
  %414 = vmatpush1.bf16.msra.mxu0 0
  %415 = vmatprep.subr.bf16.mxu0 0
  %416 = vmatpush1.bf16.msra.mxu0 0
  %417 = vmatprep.subr.bf16.mxu0 0
  %418 = vmatpush1.bf16.msra.mxu0 0
  %419 = vmatprep.subr.bf16.mxu0 0
  %420 = vmatpush1.bf16.msra.mxu0 0
  %421 = vmatprep.subr.bf16.mxu0 0
  %422 = vmatpush1.bf16.msra.mxu0 0
  %423 = vmatprep.subr.bf16.mxu0 0
  %424 = vmatpush1.bf16.msra.mxu0 0
  %425 = vmatprep.subr.bf16.mxu0 0
  %426 = vmatpush1.bf16.msra.mxu0 0
  %427 = vmatprep.subr.bf16.mxu0 0
  %428 = vmatpush1.bf16.msra.mxu0 0
  %429 = vmatprep.subr.bf16.mxu0 0
  %430 = vmatpush1.bf16.msra.mxu0 0
  %431 = vmatprep.subr.bf16.mxu0 0
  %432 = vmatpush1.bf16.msra.mxu0 0
  %433 = vmatprep.mubr.bf16.mxu0 0
  %434 = vmatmul.mubr.bf16.gmra.mrb[0].mxu0 %v390
  %v435 = vpop.f32.mrb[0].mxu0
  %v436 = vadd.f32 %v366, %v435
  %v437 = vpop.f32.mrb[0].mxu0
  %v438 = vpop.f32.mrb[0].mxu0
  %v439 = vadd.f32 %v366, %v438
  %v440 = vpop.f32.mrb[0].mxu0
  %441 = vmatprep.mubr.bf16.mxu0 0
  %442 = vmatmul.mubr.bf16.gmra.mrb[0].mxu0 %v393
  %v443 = vpop.f32.mrb[0].mxu0
  %v444 = vadd.f32 %v366, %v443
  %v445 = vpop.f32.mrb[0].mxu0
  %v446 = vpop.f32.mrb[0].mxu0
  %v447 = vadd.f32 %v366, %v446
  %v448 = vpop.f32.mrb[0].mxu0
  %449 = vmatprep.mubr.bf16.mxu0 0
  %450 = vmatmul.mubr.bf16.gmra.mrb[0].mxu0 %v396
  %v451 = vpop.f32.mrb[0].mxu0
  %v452 = vadd.f32 %v366, %v451
  %v453 = vpop.f32.mrb[0].mxu0
  %v454 = vpop.f32.mrb[0].mxu0
  %v455 = vadd.f32 %v366, %v454
  %v456 = vpop.f32.mrb[0].mxu0
  %457 = vmatprep.mubr.bf16.mxu0 0
  %458 = vmatmul.mubr.bf16.gmra.mrb[0].mxu0 %v399
  %v459 = vpop.f32.mrb[0].mxu0
  %v460 = vadd.f32 %v366, %v459
  %v461 = vpop.f32.mrb[0].mxu0
  %v462 = vpop.f32.mrb[0].mxu0
  %v463 = vadd.f32 %v366, %v462
  %v464 = vpop.f32.mrb[0].mxu0
  %465 = vdwg.mxu0
  %v466 = vmax.f32 %v436, 0.0
  %v467 = vmax.f32 %v439, 0.0
  %v468 = vmax.f32 %v444, 0.0
  %v469 = vmax.f32 %v447, 0.0
  %v470 = vmax.f32 %v452, 0.0
  %v471 = vmax.f32 %v455, 0.0
  %v472 = vmax.f32 %v460, 0.0
  %v473 = vmax.f32 %v463, 0.0
  %474 = vst [vmem:[%s8] sm:$0xff] %v466
  %475 = vst [vmem:[%s8 + $0x8] sm:$0xff] %v467
  %476 = vst [vmem:[%s8 + $0x10] sm:$0xff] %v468
  %477 = vst [vmem:[%s8 + $0x18] sm:$0xff] %v469
  %478 = vst [vmem:[%s8 + $0x20] sm:$0xff] %v470
  %479 = vst [vmem:[%s8 + $0x28] sm:$0xff] %v471
  %480 = vst [vmem:[%s8 + $0x30] sm:$0xff] %v472
  %481 = vst [vmem:[%s8 + $0x38] sm:$0xff] %v473
  %v482 = vpack.c.bf16 %v467, %v466
  %v483 = vpack.c.bf16 %v469, %v468
  %v484 = vpack.c.bf16 %v471, %v470
  %v485 = vpack.c.bf16 %v473, %v472
  %486 = vst [vmem:[#allocation2] sm:$0xff] %v482
  %487 = vst [vmem:[#allocation2 + $0x8] sm:$0xff] %v483
  %488 = vst [vmem:[#allocation2 + $0x10] sm:$0xff] %v484
  %489 = vst [vmem:[#allocation2 + $0x18] sm:$0xff] %v485
  %v490 = vld [vmem:[#allocation2] sm:$0xff]
  %v491 = vld [vmem:[#allocation2 + $0x8] sm:$0xff]
  %v492 = vld [vmem:[#allocation2 + $0x10] sm:$0xff]
  %v493 = vld [vmem:[#allocation2 + $0x18] sm:$0xff]
  %s494 = scalar_lea.vmem %s4, 64
  %v495 = vld [vmem:[%s494] sm:$0xf]
  %v496 = vld [vmem:[%s494 + $0x4] sm:$0xf]
  %v497 = vld [vmem:[%s494 + $0x8] sm:$0xf]
  %v498 = vld [vmem:[%s494 + $0xc] sm:$0xf]
  %v499 = vld [vmem:[%s494 + $0x10] sm:$0xf]
  %v500 = vld [vmem:[%s494 + $0x14] sm:$0xf]
  %v501 = vld [vmem:[%s494 + $0x18] sm:$0xf]
  %v502 = vld [vmem:[%s494 + $0x1c] sm:$0xf]
  %v503 = vld [vmem:[%s494 + $0x20] sm:$0xf]
  %v504 = vld [vmem:[%s494 + $0x24] sm:$0xf]
  %v505 = vld [vmem:[%s494 + $0x28] sm:$0xf]
  %v506 = vld [vmem:[%s494 + $0x2c] sm:$0xf]
  %v507 = vld [vmem:[%s494 + $0x30] sm:$0xf]
  %v508 = vld [vmem:[%s494 + $0x34] sm:$0xf]
  %v509 = vld [vmem:[%s494 + $0x38] sm:$0xf]
  %v510 = vld [vmem:[%s494 + $0x3c] sm:$0xf]
  %v527 = vunpack.c.l.b16 %v495
  %v528 = vunpack.c.l.b16 %v496
  %v529 = vunpack.c.l.b16 %v497
  %v530 = vunpack.c.l.b16 %v498
  %v531 = vunpack.c.l.b16 %v499
  %v532 = vunpack.c.l.b16 %v500
  %v533 = vunpack.c.l.b16 %v501
  %v534 = vunpack.c.l.b16 %v502
  %v535 = vunpack.c.l.b16 %v503
  %v536 = vunpack.c.l.b16 %v504
  %v537 = vunpack.c.l.b16 %v505
  %v538 = vunpack.c.l.b16 %v506
  %v539 = vunpack.c.l.b16 %v507
  %v540 = vunpack.c.l.b16 %v508
  %v541 = vunpack.c.l.b16 %v509
  %v542 = vunpack.c.l.b16 %v510
  %v543 = vpack.c.b16 %v528, %v527
  %v544 = vpack.c.b16 %v530, %v529
  %v545 = vpack.c.b16 %v532, %v531
  %v546 = vpack.c.b16 %v534, %v533
  %v547 = vpack.c.b16 %v536, %v535
  %v548 = vpack.c.b16 %v538, %v537
  %v549 = vpack.c.b16 %v540, %v539
  %v550 = vpack.c.b16 %v542, %v541
  %559 = vmatprep.subr.bf16.mxu0 0
  %560 = vmatpush1.bf16.msra.mxu0 %v543
  %561 = vmatprep.subr.bf16.mxu0 0
  %562 = vmatpush1.bf16.msra.mxu0 %v544
  %563 = vmatprep.subr.bf16.mxu0 0
  %564 = vmatpush1.bf16.msra.mxu0 %v545
  %565 = vmatprep.subr.bf16.mxu0 0
  %566 = vmatpush1.bf16.msra.mxu0 %v546
  %567 = vmatprep.subr.bf16.mxu0 0
  %568 = vmatpush1.bf16.msra.mxu0 %v547
  %569 = vmatprep.subr.bf16.mxu0 0
  %570 = vmatpush1.bf16.msra.mxu0 %v548
  %571 = vmatprep.subr.bf16.mxu0 0
  %572 = vmatpush1.bf16.msra.mxu0 %v549
  %573 = vmatprep.subr.bf16.mxu0 0
  %574 = vmatpush1.bf16.msra.mxu0 %v550
  %575 = vmatprep.subr.bf16.mxu0 0
  %576 = vmatpush1.bf16.msra.mxu0 0
  %577 = vmatprep.subr.bf16.mxu0 0
  %578 = vmatpush1.bf16.msra.mxu0 0
  %579 = vmatprep.subr.bf16.mxu0 0
  %580 = vmatpush1.bf16.msra.mxu0 0
  %581 = vmatprep.subr.bf16.mxu0 0
  %582 = vmatpush1.bf16.msra.mxu0 0
  %583 = vmatprep.subr.bf16.mxu0 0
  %584 = vmatpush1.bf16.msra.mxu0 0
  %585 = vmatprep.subr.bf16.mxu0 0
  %586 = vmatpush1.bf16.msra.mxu0 0
  %587 = vmatprep.subr.bf16.mxu0 0
  %588 = vmatpush1.bf16.msra.mxu0 0
  %589 = vmatprep.subr.bf16.mxu0 0
  %590 = vmatpush1.bf16.msra.mxu0 0
  %591 = vmatprep.mubr.bf16.mxu0 0
  %592 = vmatmul.mubr.bf16.gmra.mrb[0].mxu0 %v490
  %v593 = vpop.f32.mrb[0].mxu0
  %v594 = vadd.f32 0.0, %v593
  %v595 = vpop.f32.mrb[0].mxu0
  %v596 = vpop.f32.mrb[0].mxu0
  %v597 = vadd.f32 0.0, %v596
  %v598 = vpop.f32.mrb[0].mxu0
  %599 = vmatprep.mubr.bf16.mxu0 0
  %600 = vmatmul.mubr.bf16.gmra.mrb[0].mxu0 %v491
  %v601 = vpop.f32.mrb[0].mxu0
  %v602 = vadd.f32 0.0, %v601
  %v603 = vpop.f32.mrb[0].mxu0
  %v604 = vpop.f32.mrb[0].mxu0
  %v605 = vadd.f32 0.0, %v604
  %v606 = vpop.f32.mrb[0].mxu0
  %607 = vmatprep.mubr.bf16.mxu0 0
  %608 = vmatmul.mubr.bf16.gmra.mrb[0].mxu0 %v492
  %v609 = vpop.f32.mrb[0].mxu0
  %v610 = vadd.f32 0.0, %v609
  %v611 = vpop.f32.mrb[0].mxu0
  %v612 = vpop.f32.mrb[0].mxu0
  %v613 = vadd.f32 0.0, %v612
  %v614 = vpop.f32.mrb[0].mxu0
  %615 = vmatprep.mubr.bf16.mxu0 0
  %616 = vmatmul.mubr.bf16.gmra.mrb[0].mxu0 %v493
  %v617 = vpop.f32.mrb[0].mxu0
  %v618 = vadd.f32 0.0, %v617
  %v619 = vpop.f32.mrb[0].mxu0
  %v620 = vpop.f32.mrb[0].mxu0
  %v621 = vadd.f32 0.0, %v620
  %v622 = vpop.f32.mrb[0].mxu0
  %623 = vdwg.mxu0
  %v624 = vpack.c.bf16 %v597, %v594
  %v625 = vpack.c.bf16 %v605, %v602
  %v626 = vpack.c.bf16 %v613, %v610
  %v627 = vpack.c.bf16 %v621, %v618
  %s628 = scalar_lea.vmem %s5, 1
  %v629 = vld [vmem:[%s628] sm:$0x1]
  %v631 = vlaneseq
  %v632 = vshrl.u32 %v631, 7
  %v633 = vsub.s32 0, %v632
  %v634 = vrot.slane %v629, %v633
  %636 = vmatprep.subr.bf16.mxu0 0
  %637 = vmatpush1.bf16.msra.mxu0 %v624
  %638 = vmatprep.subr.bf16.mxu0 0
  %639 = vmatpush1.bf16.msra.mxu0 %v625
  %640 = vmatprep.subr.bf16.mxu0 0
  %641 = vmatpush1.bf16.msra.mxu0 %v626
  %642 = vmatprep.subr.bf16.mxu0 0
  %643 = vmatpush1.bf16.msra.mxu0 %v627
  %644 = vmatprep.subr.bf16.mxu0 0
  %645 = vmatpush1.bf16.msra.mxu0 0
  %646 = vmatprep.subr.bf16.mxu0 0
  %647 = vmatpush1.bf16.msra.mxu0 0
  %648 = vmatprep.subr.bf16.mxu0 0
  %649 = vmatpush1.bf16.msra.mxu0 0
  %650 = vmatprep.subr.bf16.mxu0 0
  %651 = vmatpush1.bf16.msra.mxu0 0
  %652 = vmatprep.subr.bf16.mxu0 0
  %653 = vmatpush1.bf16.msra.mxu0 0
  %654 = vmatprep.subr.bf16.mxu0 0
  %655 = vmatpush1.bf16.msra.mxu0 0
  %656 = vmatprep.subr.bf16.mxu0 0
  %657 = vmatpush1.bf16.msra.mxu0 0
  %658 = vmatprep.subr.bf16.mxu0 0
  %659 = vmatpush1.bf16.msra.mxu0 0
  %660 = vmatprep.subr.bf16.mxu0 0
  %661 = vmatpush1.bf16.msra.mxu0 0
  %662 = vmatprep.subr.bf16.mxu0 0
  %663 = vmatpush1.bf16.msra.mxu0 0
  %664 = vmatprep.subr.bf16.mxu0 0
  %665 = vmatpush1.bf16.msra.mxu0 0
  %666 = vmatprep.subr.bf16.mxu0 0
  %667 = vmatpush1.bf16.msra.mxu0 0
  %668 = vmatprep.mubr.bf16.mxu0 0
  %669 = vmatmul.mubr.bf16.gmra.mrb[0].mxu0 %v390
  %v670 = vpop.f32.mrb[0].mxu0
  %v671 = vadd.f32 %v634, %v670
  %v672 = vpop.f32.mrb[0].mxu0
  %v673 = vpop.f32.mrb[0].mxu0
  %v674 = vadd.f32 %v634, %v673
  %v675 = vpop.f32.mrb[0].mxu0
  %676 = vmatprep.mubr.bf16.mxu0 0
  %677 = vmatmul.mubr.bf16.gmra.mrb[0].mxu0 %v393
  %v678 = vpop.f32.mrb[0].mxu0
  %v679 = vadd.f32 %v634, %v678
  %v680 = vpop.f32.mrb[0].mxu0
  %v681 = vpop.f32.mrb[0].mxu0
  %v682 = vadd.f32 %v634, %v681
  %v683 = vpop.f32.mrb[0].mxu0
  %684 = vmatprep.mubr.bf16.mxu0 0
  %685 = vmatmul.mubr.bf16.gmra.mrb[0].mxu0 %v396
  %v686 = vpop.f32.mrb[0].mxu0
  %v687 = vadd.f32 %v634, %v686
  %v688 = vpop.f32.mrb[0].mxu0
  %v689 = vpop.f32.mrb[0].mxu0
  %v690 = vadd.f32 %v634, %v689
  %v691 = vpop.f32.mrb[0].mxu0
  %692 = vmatprep.mubr.bf16.mxu0 0
  %693 = vmatmul.mubr.bf16.gmra.mrb[0].mxu0 %v399
  %v694 = vpop.f32.mrb[0].mxu0
  %v695 = vadd.f32 %v634, %v694
  %v696 = vpop.f32.mrb[0].mxu0
  %v697 = vpop.f32.mrb[0].mxu0
  %v698 = vadd.f32 %v634, %v697
  %v699 = vpop.f32.mrb[0].mxu0
  %700 = vdwg.mxu0
  %v701 = vmax.f32 %v671, 0.0
  %v702 = vmax.f32 %v674, 0.0
  %v703 = vmax.f32 %v679, 0.0
  %v704 = vmax.f32 %v682, 0.0
  %v705 = vmax.f32 %v687, 0.0
  %v706 = vmax.f32 %v690, 0.0
  %v707 = vmax.f32 %v695, 0.0
  %v708 = vmax.f32 %v698, 0.0
  %s709 = scalar_lea.vmem %s8, 64
  %710 = vst [vmem:[%s709] sm:$0xff] %v701
  %711 = vst [vmem:[%s709 + $0x8] sm:$0xff] %v702
  %712 = vst [vmem:[%s709 + $0x10] sm:$0xff] %v703
  %713 = vst [vmem:[%s709 + $0x18] sm:$0xff] %v704
  %714 = vst [vmem:[%s709 + $0x20] sm:$0xff] %v705
  %715 = vst [vmem:[%s709 + $0x28] sm:$0xff] %v706
  %716 = vst [vmem:[%s709 + $0x30] sm:$0xff] %v707
  %717 = vst [vmem:[%s709 + $0x38] sm:$0xff] %v708
  %v718 = vpack.c.bf16 %v702, %v701
  %v719 = vpack.c.bf16 %v704, %v703
  %v720 = vpack.c.bf16 %v706, %v705
  %v721 = vpack.c.bf16 %v708, %v707
  %722 = vst [vmem:[#allocation2] sm:$0xff] %v718
  %723 = vst [vmem:[#allocation2 + $0x8] sm:$0xff] %v719
  %724 = vst [vmem:[#allocation2 + $0x10] sm:$0xff] %v720
  %725 = vst [vmem:[#allocation2 + $0x18] sm:$0xff] %v721
  %v726 = vld [vmem:[#allocation2] sm:$0xff]
  %v727 = vld [vmem:[#allocation2 + $0x8] sm:$0xff]
  %v728 = vld [vmem:[#allocation2 + $0x10] sm:$0xff]
  %v729 = vld [vmem:[#allocation2 + $0x18] sm:$0xff]
  %v730 = vld [vmem:[%s6] sm:$0xf]
  %v731 = vld [vmem:[%s6 + $0x4] sm:$0xf]
  %v732 = vld [vmem:[%s6 + $0x8] sm:$0xf]
  %v733 = vld [vmem:[%s6 + $0xc] sm:$0xf]
  %v734 = vld [vmem:[%s6 + $0x10] sm:$0xf]
  %v735 = vld [vmem:[%s6 + $0x14] sm:$0xf]
  %v736 = vld [vmem:[%s6 + $0x18] sm:$0xf]
  %v737 = vld [vmem:[%s6 + $0x1c] sm:$0xf]
  %v738 = vld [vmem:[%s6 + $0x20] sm:$0xf]
  %v739 = vld [vmem:[%s6 + $0x24] sm:$0xf]
  %v740 = vld [vmem:[%s6 + $0x28] sm:$0xf]
  %v741 = vld [vmem:[%s6 + $0x2c] sm:$0xf]
  %v742 = vld [vmem:[%s6 + $0x30] sm:$0xf]
  %v743 = vld [vmem:[%s6 + $0x34] sm:$0xf]
  %v744 = vld [vmem:[%s6 + $0x38] sm:$0xf]
  %v745 = vld [vmem:[%s6 + $0x3c] sm:$0xf]
  %v746 = vld [vmem:[%s7] sm:$0x1]
  %v748 = vlaneseq
  %v749 = vshrl.u32 %v748, 7
  %v750 = vsub.s32 0, %v749
  %v751 = vrot.slane %v746, %v750
  %v769 = vunpack.c.l.b16 %v730
  %v770 = vunpack.c.l.b16 %v731
  %v771 = vunpack.c.l.b16 %v732
  %v772 = vunpack.c.l.b16 %v733
  %v773 = vunpack.c.l.b16 %v734
  %v774 = vunpack.c.l.b16 %v735
  %v775 = vunpack.c.l.b16 %v736
  %v776 = vunpack.c.l.b16 %v737
  %v777 = vunpack.c.l.b16 %v738
  %v778 = vunpack.c.l.b16 %v739
  %v779 = vunpack.c.l.b16 %v740
  %v780 = vunpack.c.l.b16 %v741
  %v781 = vunpack.c.l.b16 %v742
  %v782 = vunpack.c.l.b16 %v743
  %v783 = vunpack.c.l.b16 %v744
  %v784 = vunpack.c.l.b16 %v745
  %v785 = vpack.c.b16 %v770, %v769
  %v786 = vpack.c.b16 %v772, %v771
  %v787 = vpack.c.b16 %v774, %v773
  %v788 = vpack.c.b16 %v776, %v775
  %v789 = vpack.c.b16 %v778, %v777
  %v790 = vpack.c.b16 %v780, %v779
  %v791 = vpack.c.b16 %v782, %v781
  %v792 = vpack.c.b16 %v784, %v783
  %801 = vmatprep.subr.bf16.mxu0 0
  %802 = vmatpush1.bf16.msra.mxu0 %v785
  %803 = vmatprep.subr.bf16.mxu0 0
  %804 = vmatpush1.bf16.msra.mxu0 %v786
  %805 = vmatprep.subr.bf16.mxu0 0
  %806 = vmatpush1.bf16.msra.mxu0 %v787
  %807 = vmatprep.subr.bf16.mxu0 0
  %808 = vmatpush1.bf16.msra.mxu0 %v788
  %809 = vmatprep.subr.bf16.mxu0 0
  %810 = vmatpush1.bf16.msra.mxu0 %v789
  %811 = vmatprep.subr.bf16.mxu0 0
  %812 = vmatpush1.bf16.msra.mxu0 %v790
  %813 = vmatprep.subr.bf16.mxu0 0
  %814 = vmatpush1.bf16.msra.mxu0 %v791
  %815 = vmatprep.subr.bf16.mxu0 0
  %816 = vmatpush1.bf16.msra.mxu0 %v792
  %817 = vmatprep.subr.bf16.mxu0 0
  %818 = vmatpush1.bf16.msra.mxu0 0
  %819 = vmatprep.subr.bf16.mxu0 0
  %820 = vmatpush1.bf16.msra.mxu0 0
  %821 = vmatprep.subr.bf16.mxu0 0
  %822 = vmatpush1.bf16.msra.mxu0 0
  %823 = vmatprep.subr.bf16.mxu0 0
  %824 = vmatpush1.bf16.msra.mxu0 0
  %825 = vmatprep.subr.bf16.mxu0 0
  %826 = vmatpush1.bf16.msra.mxu0 0
  %827 = vmatprep.subr.bf16.mxu0 0
  %828 = vmatpush1.bf16.msra.mxu0 0
  %829 = vmatprep.subr.bf16.mxu0 0
  %830 = vmatpush1.bf16.msra.mxu0 0
  %831 = vmatprep.subr.bf16.mxu0 0
  %832 = vmatpush1.bf16.msra.mxu0 0
  %833 = vmatprep.mubr.bf16.mxu0 0
  %834 = vmatmul.mubr.bf16.gmra.mrb[0].mxu0 %v726
  %v835 = vpop.f32.mrb[0].mxu0
  %v836 = vadd.f32 %v751, %v835
  %v837 = vpop.f32.mrb[0].mxu0
  %v838 = vpop.f32.mrb[0].mxu0
  %v839 = vadd.f32 %v751, %v838
  %v840 = vpop.f32.mrb[0].mxu0
  %841 = vmatprep.mubr.bf16.mxu0 0
  %842 = vmatmul.mubr.bf16.gmra.mrb[0].mxu0 %v727
  %v843 = vpop.f32.mrb[0].mxu0
  %v844 = vadd.f32 %v751, %v843
  %v845 = vpop.f32.mrb[0].mxu0
  %v846 = vpop.f32.mrb[0].mxu0
  %v847 = vadd.f32 %v751, %v846
  %v848 = vpop.f32.mrb[0].mxu0
  %849 = vmatprep.mubr.bf16.mxu0 0
  %850 = vmatmul.mubr.bf16.gmra.mrb[0].mxu0 %v728
  %v851 = vpop.f32.mrb[0].mxu0
  %v852 = vadd.f32 %v751, %v851
  %v853 = vpop.f32.mrb[0].mxu0
  %v854 = vpop.f32.mrb[0].mxu0
  %v855 = vadd.f32 %v751, %v854
  %v856 = vpop.f32.mrb[0].mxu0
  %857 = vmatprep.mubr.bf16.mxu0 0
  %858 = vmatmul.mubr.bf16.gmra.mrb[0].mxu0 %v729
  %v859 = vpop.f32.mrb[0].mxu0
  %v860 = vadd.f32 %v751, %v859
  %v861 = vpop.f32.mrb[0].mxu0
  %v862 = vpop.f32.mrb[0].mxu0
  %v863 = vadd.f32 %v751, %v862
  %v864 = vpop.f32.mrb[0].mxu0
  %865 = vdwg.mxu0
  %866 = vst [vmem:[%s9] sm:$0xff] %v836
  %867 = vst [vmem:[%s9 + $0x8] sm:$0xff] %v839
  %868 = vst [vmem:[%s9 + $0x10] sm:$0xff] %v844
  %869 = vst [vmem:[%s9 + $0x18] sm:$0xff] %v847
  %870 = vst [vmem:[%s9 + $0x20] sm:$0xff] %v852
  %871 = vst [vmem:[%s9 + $0x28] sm:$0xff] %v855
  %872 = vst [vmem:[%s9 + $0x30] sm:$0xff] %v860
  %873 = vst [vmem:[%s9 + $0x38] sm:$0xff] %v863
  // Predicated region
  $region34: #{fused_dgn_forward.1} parent=0 // pred_check
    _
  $region35: #{fused_dgn_forward.1} parent=0 // pred_check_branch
    %875 = sbr.rel (0) target = $region37
  $region36: #{fused_dgn_forward.1} parent=0 // pred_region
    _
  $region37: #{fused_dgn_forward.1} parent=0 // pred_fallthru
    _
  // Predicated region
  $region38: #{fused_dgn_forward.1} parent=0 // pred_check
    _
  $region39: #{fused_dgn_forward.1} parent=0 // pred_check_branch
    %877 = sbr.rel (0) target = $region41
  $region40: #{fused_dgn_forward.1} parent=0 // pred_region
    _
  $region41: #{fused_dgn_forward.1} parent=0 // pred_fallthru
    _
  // Predicated region
  $region42: #{fused_dgn_forward.1} parent=0 // pred_check
    _
  $region43: #{fused_dgn_forward.1} parent=0 // pred_check_branch
    %879 = sbr.rel (0) target = $region45
  $region44: #{fused_dgn_forward.1} parent=0 // pred_region
    _
  $region45: #{fused_dgn_forward.1} parent=0 // pred_fallthru
    _
  // Predicated region
  $region46: #{fused_dgn_forward.1} parent=0 // pred_check
    _
  $region47: #{fused_dgn_forward.1} parent=0 // pred_check_branch
    %881 = sbr.rel (0) target = $region49
  $region48: #{fused_dgn_forward.1} parent=0 // pred_region
    _
  $region49: #{fused_dgn_forward.1} parent=0 // pred_fallthru
    _

</llo_original>
